<compile_context>
chip_gen: v5e
topology: v5e:2x2
jax: 0.10.0
libtpu: 0.0.40
codegen_flags: <defaults>
</compile_context>

<pallas_src>
import jax
import jax.numpy as jnp
from jax.experimental import pallas as pl
from jax.experimental.pallas import tpu as pltpu


_LANE = 128
_SUBLANE = 8
# ~4 MiB blocks: double-buffered input + output (~4x block) stays well under
# the scoped-VMEM limit we request below on every TPU generation.
_TARGET_BLOCK_BYTES = 4 * 1024 * 1024
_VMEM_LIMIT_BYTES = 32 * 1024 * 1024


def _asym_kernel(params_ref, x_ref, o_ref):
    # params_ref: (3, rows, 1) -> [cut, w0, w1] per row; x_ref/o_ref: (rows, tile)
    x = x_ref[...]
    cut = params_ref[0]          # (rows, 1) -> broadcasts over the lane dim
    w0 = params_ref[1]
    w1 = params_ref[2]
    o_ref[...] = x * jnp.where(x < cut, w0, w1)


def _pick_row_fold(rows: int, h: int) -> int:
    """Smallest divisor f of h such that rows*f is a multiple of 8 (else 1)."""
    if rows % _SUBLANE == 0:
        return 1
    for f in range(1, h + 1):
        if h % f == 0 and (rows * f) % _SUBLANE == 0:
            return f
    return 1


def asym_param_output(x: jnp.ndarray, weight: jnp.ndarray, cuts) -> jnp.ndarray:
    """x: (N, C, H, W) float (NCHW, matching PyTorch). weight: (3, 2). cuts: 3 ints."""
    assert x.ndim == 4, "expected NCHW input"
    N, C, H, W = x.shape
    dtype = x.dtype
    itemsize = jnp.dtype(dtype).itemsize
    weight = weight.astype(dtype)
    cuts_f = jnp.asarray(cuts, dtype=dtype)

    # Per-channel (cut, w0, w1) according to the 420 / 444 convention.
    if C == 6:
        # YUV420-packed: channels 0:4 -> group 0, 4 -> group 1, 5 -> group 2.
        group = jnp.array([0, 0, 0, 0, 1, 2], dtype=jnp.int32)
        has_group = jnp.ones((C,), dtype=bool)
    else:
        # YUV444: channels 0,1,2 -> groups 0,1,2; remaining channels pass through.
        group = jnp.clip(jnp.arange(C, dtype=jnp.int32), 0, 2)
        has_group = jnp.arange(C) < 3

    cut_c = jnp.where(has_group, cuts_f[group], jnp.zeros((C,), dtype))
    w0_c = jnp.where(has_group, weight[group, 0], jnp.ones((C,), dtype))
    w1_c = jnp.where(has_group, weight[group, 1], jnp.ones((C,), dtype))

    # Fold a divisor of H into rows so the sublane dim is a multiple of 8.
    f = _pick_row_fold(N * C, H)
    rows = N * C * f
    cols = (H // f) * W
    x2 = x.reshape(rows, cols)                      # pure row-major reshape

    # Single packed per-row parameter array: (3, rows, 1).
    ch = (jnp.arange(rows, dtype=jnp.int32) // f) % C
    params = jnp.stack([cut_c[ch], w0_c[ch], w1_c[ch]], axis=0)[..., None]

    # Lane tile: largest 128-multiple giving ~_TARGET_BLOCK_BYTES per block.
    rows_pad = ((rows + _SUBLANE - 1) // _SUBLANE) * _SUBLANE
    if cols <= _LANE:
        tile = cols                                 # tiny case: one full-dim block
    else:
        max_tile = (cols // _LANE) * _LANE
        budget_tile = max(
            _LANE, (_TARGET_BLOCK_BYTES // (rows_pad * itemsize)) // _LANE * _LANE)
        tile = min(budget_tile, max_tile)
        # Keep >= 2 grid steps when there is enough data: v7x shards the
        # "parallel" axis across its 2 TensorCores.
        if -(-cols // tile) < 2 and cols >= 2 * _LANE:
            tile = max(_LANE, (cols // 2) // _LANE * _LANE)
    num_steps = -(-cols // tile)

    nbytes = int(x.size) * itemsize
    out2 = pl.pallas_call(
        _asym_kernel,
        out_shape=jax.ShapeDtypeStruct((rows, cols), dtype),
        grid_spec=pltpu.PrefetchScalarGridSpec(
            num_scalar_prefetch=0,
            grid=(num_steps,),
            in_specs=[
                pl.BlockSpec((3, rows, 1), lambda j: (0, 0, 0)),
                pl.BlockSpec((rows, tile), lambda j: (0, j)),
            ],
            out_specs=pl.BlockSpec((rows, tile), lambda j: (0, j)),
        ),
        compiler_params=pltpu.CompilerParams(
            dimension_semantics=("parallel",),
            vmem_limit_bytes=_VMEM_LIMIT_BYTES,
        ),
        cost_estimate=pl.CostEstimate(
            flops=2 * int(x.size), transcendentals=0, bytes_accessed=2 * nbytes),
    )(params, x2)

    return out2.reshape(N, C, H, W)


def _reference(x, weight, cuts):
    """Pure-JAX port of the PyTorch forward for verification."""
    C = x.shape[-3]
    o = x
    if C == 6:
        slices = [(0, 4, 0), (4, 5, 1), (5, 6, 2)]
    else:
        slices = [(0, 1, 0), (1, 2, 1), (2, 3, 2)]
    for lo, hi, g in slices:
        v = x[..., lo:hi, :, :]
        o = o.at[..., lo:hi, :, :].set(
            jnp.where(v < cuts[g], v * weight[g, 0], v * weight[g, 1]))
    return o


if __name__ == "__main__":
    key = jax.random.PRNGKey(0)
    kx, kw = jax.random.split(key)

    # Module parameters: weight (3, 2) (default ones; use non-trivial values so
    # both where-branches are exercised), cuts: Tuple[int, int, int].
    weight = 1.0 + 0.5 * jax.random.normal(kw, (3, 2), dtype=jnp.float32)
    cuts = (0, 0, 0)
    cuts_f = jnp.asarray(cuts, jnp.float32)

    # 420-style input: C == 6 (4 packed Y planes + U + V).
    x420 = jax.random.normal(kx, (2, 6, 16, 16), dtype=jnp.float32)
    out420 = jax.block_until_ready(asym_param_output(x420, weight, cuts))
    assert jnp.allclose(out420, _reference(x420, weight, cuts_f), atol=1e-6), "420 mismatch"

    # 444-style input: C == 4 (channels >= 3 pass through untouched).
    x444 = jax.random.normal(kx, (2, 4, 16, 16), dtype=jnp.float32)
    out444 = jax.block_until_ready(asym_param_output(x444, weight, cuts))
    assert jnp.allclose(out444, _reference(x444, weight, cuts_f), atol=1e-6), "444 mismatch"

    # Non-128-multiple spatial size: exercises row folding + remainder block.
    xodd = jax.random.normal(kx, (1, 4, 8, 40), dtype=jnp.float32)
    outodd = jax.block_until_ready(asym_param_output(xodd, weight, cuts))
    assert jnp.allclose(outodd, _reference(xodd, weight, cuts_f), atol=1e-6), "odd mismatch"

    print("KERNEL_OK")
</pallas_src>

<mosaic_0001>
module attributes {stable_mosaic.version = 11 : i64} {
  func.func @_asym_kernel(%arg0: i32, %arg1: memref<3x24x1xf32, #tpu.memory_space<vmem>>, %arg2: memref<24x128xf32, #tpu.memory_space<vmem>>, %arg3: memref<24x128xf32, #tpu.memory_space<vmem>>) attributes {dimension_semantics = [#tpu.dimension_semantics<parallel>], iteration_bounds = array<i64: 1>, scalar_prefetch = 0 : i64, scratch_operands = 0 : i64, tpu.core_type = #tpu.core_type<tc>, window_params = [{pipeline_mode = #tpu.pipeline_mode<synchronous>, transform_indices = @transform_0, window_bounds = array<i64: 3, 24, 1>}, {transform_indices = @transform_1, window_bounds = array<i64: 24, 128>}, {transform_indices = @transform_2, window_bounds = array<i64: 24, 128>}]} {
    %c0 = arith.constant 0 : index
    %c0_0 = arith.constant 0 : index
    %0 = vector.load %arg2[%c0, %c0_0] : memref<24x128xf32, #tpu.memory_space<vmem>>, vector<24x128xf32>
    %c0_1 = arith.constant 0 : index
    %c0_2 = arith.constant 0 : index
    %c0_3 = arith.constant 0 : index
    %1 = vector.load %arg1[%c0_1, %c0_2, %c0_3] : memref<3x24x1xf32, #tpu.memory_space<vmem>>, vector<1x24x1xf32>
    %2 = vector.shape_cast %1 : vector<1x24x1xf32> to vector<24x1xf32>
    %c1 = arith.constant 1 : index
    %c0_4 = arith.constant 0 : index
    %c0_5 = arith.constant 0 : index
    %3 = vector.load %arg1[%c1, %c0_4, %c0_5] : memref<3x24x1xf32, #tpu.memory_space<vmem>>, vector<1x24x1xf32>
    %4 = vector.shape_cast %3 : vector<1x24x1xf32> to vector<24x1xf32>
    %c2 = arith.constant 2 : index
    %c0_6 = arith.constant 0 : index
    %c0_7 = arith.constant 0 : index
    %5 = vector.load %arg1[%c2, %c0_6, %c0_7] : memref<3x24x1xf32, #tpu.memory_space<vmem>>, vector<1x24x1xf32>
    %6 = vector.shape_cast %5 : vector<1x24x1xf32> to vector<24x1xf32>
    %7 = vector.broadcast %2 : vector<24x1xf32> to vector<24x128xf32>
    %8 = arith.cmpf olt, %0, %7 : vector<24x128xf32>
    %9 = vector.shape_cast %4 : vector<24x1xf32> to vector<24x1xf32>
    %10 = vector.broadcast %9 : vector<24x1xf32> to vector<24x128xf32>
    %11 = vector.shape_cast %6 : vector<24x1xf32> to vector<24x1xf32>
    %12 = vector.broadcast %11 : vector<24x1xf32> to vector<24x128xf32>
    %13 = arith.select %8, %10, %12 : vector<24x128xi1>, vector<24x128xf32>
    %14 = arith.mulf %0, %13 : vector<24x128xf32>
    %c0_8 = arith.constant 0 : index
    %c0_9 = arith.constant 0 : index
    %15 = vector.load %arg3[%c0_8, %c0_9] : memref<24x128xf32, #tpu.memory_space<vmem>>, vector<24x128xf32>
    tpu.vector_store %arg3[%c0_8, %c0_9], %14 {strides = array<i32>} : memref<24x128xf32, #tpu.memory_space<vmem>>, vector<24x128xf32>,
    return
  }
  func.func @transform_0(%arg0: i32) -> (i32, i32, i32) {
    %c0_i32 = arith.constant 0 : i32
    %c0_i32_0 = arith.constant 0 : i32
    %c0_i32_1 = arith.constant 0 : i32
    %c0_i32_2 = arith.constant 0 : i32
    return %c0_i32, %c0_i32_0, %c0_i32_1 : i32, i32, i32
  }
  func.func @transform_1(%arg0: i32) -> (i32, i32) {
    %c0_i32 = arith.constant 0 : i32
    %c0_i32_0 = arith.constant 0 : i32
    return %c0_i32, %arg0 : i32, i32
  }
  func.func @transform_2(%arg0: i32) -> (i32, i32) {
    %c0_i32 = arith.constant 0 : i32
    %c0_i32_0 = arith.constant 0 : i32
    return %c0_i32, %arg0 : i32, i32
  }
}

</mosaic_0001>

<llo_original>
// kernel: tpu_custom_call.1
$region0: #{tpu_custom_call.1}
  #allocation0 [shape = 'u32[]', space=smem, size = 0x4, offset = 0x4, fixed_abs, tag = 'smem constant byte address 0x4 - core index']
  #allocation1 [shape = 'u32[72,128]{1,0:T(1,128)}', space=vmem, size = 0x9000, scoped, tag = 'internal scratch']
  %s0 = inlined_call_operand.vmem [shape: f32[3,24,1], index: 0, kind: input, shape index: {}]
  %s1 = inlined_call_operand.vmem [shape: f32[24,128], index: 1, kind: input, shape index: {}]
  %s2 = inlined_call_operand.hbm [shape: f32[24,128], index: 2, kind: output, shape index: {}]
  %s3 = sld [smem:[#allocation0]]
  $region18: #{tpu_custom_call.1} parent=0
    _
  %s5 = ssub.s32 1, %s3
  %s6 = scalar_select 0, %s5, %s3
  $region1: #{tpu_custom_call.1} parent=0
    #allocation2 [shape = 'u8[12288]{0}', space=vmem, size = 0x3000, scoped, tag = 'output window, operand 0, single buffered']
    #allocation3 [shape = 's32[1]{0}', space=sflag, size = 0x4, scoped, tag = 'scoped memory for tpu_custom_call.1']
    %7 = vsyncpa [#allocation3], 0
    // Predicated region
    $region2: #{tpu_custom_call.1} parent=1 // pred_check
      _
    $region3: #{tpu_custom_call.1} parent=1 // pred_check_branch
      %9 = sbr.rel (0) target = $region5
    $region4: #{tpu_custom_call.1} parent=1 // pred_region
      _
    $region5: #{tpu_custom_call.1} parent=1 // pred_fallthru
      _
    // Predicated region
    $region6: #{tpu_custom_call.1} parent=1 // pred_check
      _
    $region7: #{tpu_custom_call.1} parent=1 // pred_check_branch
      %11 = sbr.rel (0) target = $region9
    $region8: #{tpu_custom_call.1} parent=1 // pred_region
      _
    $region9: #{tpu_custom_call.1} parent=1 // pred_fallthru
      _
    %v12 = vld [vmem:[%s1] sm:$0xff]
    %v13 = vld [vmem:[%s1 + $0x8] sm:$0xff]
    %v14 = vld [vmem:[%s1 + $0x10] sm:$0xff]
    %v15 = vld [vmem:[%s0] sm:$0xff]
    %v16 = vld [vmem:[%s0 + $0x8] sm:$0xff]
    %v17 = vld [vmem:[%s0 + $0x10] sm:$0xff]
    %s18 = scalar_lea.vmem %s0, 24
    %v19 = vld [vmem:[%s18] sm:$0xff]
    %v20 = vld [vmem:[%s18 + $0x8] sm:$0xff]
    %v21 = vld [vmem:[%s18 + $0x10] sm:$0xff]
    %s22 = scalar_lea.vmem %s0, 48
    %v23 = vld [vmem:[%s22] sm:$0xff]
    %v24 = vld [vmem:[%s22 + $0x8] sm:$0xff]
    %v25 = vld [vmem:[%s22 + $0x10] sm:$0xff]
    %27 = vset.pattern.permute.xlu0 0
    %28 = vperm.xlu0 %27, %v15
    %v29 = vpop.permute.xlu0 %28
    %32 = vset.pattern.permute.xlu0 0
    %33 = vperm.xlu0 %32, %v16
    %v34 = vpop.permute.xlu0 %33
    %37 = vset.pattern.permute.xlu0 0
    %38 = vperm.xlu0 %37, %v17
    %v39 = vpop.permute.xlu0 %38
    %vm41 = vcmp.lt.f32.partialorder %v12, %v29
    %vm42 = vcmp.lt.f32.partialorder %v13, %v34
    %vm43 = vcmp.lt.f32.partialorder %v14, %v39
    %45 = vset.pattern.permute.xlu0 0
    %46 = vperm.xlu0 %45, %v19
    %v47 = vpop.permute.xlu0 %46
    %50 = vset.pattern.permute.xlu0 0
    %51 = vperm.xlu0 %50, %v20
    %v52 = vpop.permute.xlu0 %51
    %55 = vset.pattern.permute.xlu0 0
    %56 = vperm.xlu0 %55, %v21
    %v57 = vpop.permute.xlu0 %56
    %60 = vset.pattern.permute.xlu0 0
    %61 = vperm.xlu0 %60, %v23
    %v62 = vpop.permute.xlu0 %61
    %65 = vset.pattern.permute.xlu0 0
    %66 = vperm.xlu0 %65, %v24
    %v67 = vpop.permute.xlu0 %66
    %70 = vset.pattern.permute.xlu0 0
    %71 = vperm.xlu0 %70, %v25
    %v72 = vpop.permute.xlu0 %71
    %v74 = vsel %vm41, %v47, %v62
    %v75 = vsel %vm42, %v52, %v67
    %v76 = vsel %vm43, %v57, %v72
    %v77 = vmul.f32 %v12, %v74
    %v78 = vmul.f32 %v13, %v75
    %v79 = vmul.f32 %v14, %v76
    %80 = vst [vmem:[#allocation2] sm:$0xff] %v77
    %81 = vst [vmem:[#allocation2 + $0x8] sm:$0xff] %v78
    %82 = vst [vmem:[#allocation2 + $0x10] sm:$0xff] %v79
    // Predicated region
    $region10: #{tpu_custom_call.1} parent=1 // pred_check
      _
    $region11: #{tpu_custom_call.1} parent=1 // pred_check_branch
      %84 = sbr.rel (0) target = $region13
    $region12: #{tpu_custom_call.1} parent=1 // pred_region
      %86 = vsyncadd [#allocation3], 0
      %s87 = sshll.u32 [#allocation2], 4
      %s88 = int_to_ptr.vmem [resolvable:$true] %s87
      %s89 = sshll.u32 %s2, 4
      %s90 = int_to_ptr.hbm [resolvable:$true] %s89
      %95 = dma.vmem_to_hbm [thread:$0]  %s88, 384, %s90, [#allocation3], 128, 128, 8
    $region13: #{tpu_custom_call.1} parent=1 // pred_fallthru
      _
    // Predicated region
    $region14: #{tpu_custom_call.1} parent=1 // pred_check
      _
    $region15: #{tpu_custom_call.1} parent=1 // pred_check_branch
      %97 = sbr.rel (0) target = $region17
    $region16: #{tpu_custom_call.1} parent=1 // pred_region
      %99 = dma.done [#allocation3], 384
    $region17: #{tpu_custom_call.1} parent=1 // pred_fallthru
      _
    %100 = vsyncpa [#allocation3], 1

</llo_original>
